<compile_context>
chip_gen: v7x
topology: tpu7x:2x2x1
jax: 0.10.0
libtpu: 0.0.40
codegen_flags: <defaults>
</compile_context>

<pallas_src>
import functools

import jax
import jax.numpy as jnp
from jax.experimental import pallas as pl
from jax.experimental.pallas import tpu as pltpu

SMOOTH = 1.0
EPS = 1e-07

LANES = 128
DEFAULT_BLOCK_ROWS = 4096   # (4096, 128) f32 tile = 2 MiB per stream per buffer
NUM_PARALLEL = 2            # leading grid axis (sharded across TCs where supported)


def _round_up(a, b):
    return (a + b - 1) // b * b


def _dice_partial_kernel(x_ref, t_ref, pt_ref, s_ref, *,
                         n, block_rows, blocks_per_core, needs_mask):
    """Accumulate sum(p*t) and sum(p+t) into VMEM-resident (1, 8, 128) blocks.

    x_ref, t_ref : VMEM (block_rows, 128) tiles in their native dtypes
    pt_ref       : VMEM (1, 8, 128) f32 — running sum of p*t for this core
    s_ref        : VMEM (1, 8, 128) f32 — running sum of p+t for this core
    """
    p_id = pl.program_id(0)   # parallel (per-core) axis
    k_id = pl.program_id(1)   # reduction axis (output block carried across it)

    @pl.when(k_id == 0)
    def _():
        pt_ref[...] = jnp.zeros_like(pt_ref)
        s_ref[...] = jnp.zeros_like(s_ref)

    x = x_ref[...].astype(jnp.float32)
    t = t_ref[...].astype(jnp.float32)
    # Single-EUP sigmoid: 0.5*tanh(0.5*x)+0.5 == sigmoid(x).
    p = 0.5 * jnp.tanh(0.5 * x) + 0.5

    def accumulate(valid):
        pt = p * t
        s = p + t
        if valid is not None:
            # Mask the products/sums themselves: data past the end of the array
            # is undefined (possibly NaN), so masking only p is not enough.
            pt = jnp.where(valid, pt, 0.0)
            s = jnp.where(valid, s, 0.0)
        # (block_rows,128) -> (block_rows//8, 8, 128): layout-preserving sublane
        # split; the axis-0 sum is pure VPU vreg adds (no XLU on the hot path).
        pt_ref[...] += jnp.sum(pt.reshape(block_rows // 8, 8, LANES),
                               axis=0, keepdims=True)
        s_ref[...] += jnp.sum(s.reshape(block_rows // 8, 8, LANES),
                              axis=0, keepdims=True)

    if not needs_mask:
        accumulate(None)
    else:
        # Work in row units so the comparison stays well inside int32 for any
        # realistic n (only overflows for n >= 2**38 elements).
        full_rows = n // LANES        # python int (trace-time constant)
        rem = n % LANES               # python int
        block_row0 = (p_id * blocks_per_core + k_id) * block_rows

        @pl.when(block_row0 + block_rows <= full_rows)
        def _():                      # block fully inside the valid range
            accumulate(None)

        @pl.when(block_row0 + block_rows > full_rows)
        def _():                      # boundary / rounded-up (clamped) block
            row = jax.lax.broadcasted_iota(jnp.int32, (block_rows, LANES), 0)
            lane = jax.lax.broadcasted_iota(jnp.int32, (block_rows, LANES), 1)
            grow = block_row0 + row
            valid = (grow < full_rows) | ((grow == full_rows) & (lane < rem))
            accumulate(valid)


def dice_loss(inputs, targets, smooth=SMOOTH, eps=EPS, *, block_rows=None):
    """inputs: logits [N, 1, H, W]; targets: binary masks [N, 1, H, W]."""
    x = jnp.reshape(inputs, (-1,))
    t = jnp.reshape(targets, (-1,))
    if t.dtype == jnp.bool_:
        # Narrow the target stream to 1 byte/elem for the kernel.
        # TODO(synk): this astype is one extra HBM pass over t; prefer feeding
        # int8 / bf16 / f32 masks directly (they are streamed as-is).
        t = t.astype(jnp.int8)
    n = x.shape[0]

    # Reshape the flat streams to (rows, 128).  The reshape is free; only if n
    # is not a multiple of 128 do we pay a pad (<=127 extra elements).
    lane_pad = (-n) % LANES
    if lane_pad:
        # TODO(synk): jnp.pad copies both streams once; only hit when n%128!=0.
        x = jnp.pad(x, (0, lane_pad))
        t = jnp.pad(t, (0, lane_pad))
    rows = (n + lane_pad) // LANES
    x2 = x.reshape(rows, LANES)
    t2 = t.reshape(rows, LANES)

    # Tile sizing: big lane-dense blocks, rounded to 32 sublanes so the block
    # shape satisfies packed-tile minimums for f32/bf16/int8 inputs alike.
    if block_rows is None:
        block_rows = min(DEFAULT_BLOCK_ROWS, _round_up(rows, 32))
    num_blocks = pl.cdiv(rows, block_rows)
    num_parallel = max(1, min(NUM_PARALLEL, num_blocks))
    blocks_per_core = pl.cdiv(num_blocks, num_parallel)

    # Mask code is only compiled in when the grid does not exactly cover n.
    needs_mask = (num_parallel * blocks_per_core * block_rows * LANES) != n

    kernel = functools.partial(
        _dice_partial_kernel, n=n, block_rows=block_rows,
        blocks_per_core=blocks_per_core, needs_mask=needs_mask)

    if num_parallel * blocks_per_core > num_blocks:
        # Rounded-up grid steps are clamped onto the last real block so the DMA
        # never walks past the array; their nominal range starts past n, so the
        # in-kernel mask zeroes their contribution.
        def in_index_map(p, k):
            return (jnp.minimum(p * blocks_per_core + k, num_blocks - 1), 0)
    else:
        def in_index_map(p, k):
            return (p * blocks_per_core + k, 0)

    in_spec = pl.BlockSpec((block_rows, LANES), in_index_map)
    out_spec = pl.BlockSpec((1, 8, LANES), lambda p, k: (p, 0, 0))

    # 2 input streams x 2 pipeline buffers x block bytes + headroom, set
    # explicitly so enlarging the block never hits a silent scoped-VMEM limit.
    block_bytes = block_rows * LANES * (x2.dtype.itemsize + t2.dtype.itemsize)
    vmem_limit = int(2 * block_bytes + (4 << 20))

    part_pt, part_s = pl.pallas_call(
        kernel,
        out_shape=(
            jax.ShapeDtypeStruct((num_parallel, 8, LANES), jnp.float32),
            jax.ShapeDtypeStruct((num_parallel, 8, LANES), jnp.float32),
        ),
        grid_spec=pltpu.PrefetchScalarGridSpec(
            num_scalar_prefetch=0,
            grid=(num_parallel, blocks_per_core),
            in_specs=[in_spec, in_spec],
            out_specs=[out_spec, out_spec],
        ),
        compiler_params=pltpu.CompilerParams(
            # TODO(synk): on v7x, pltpu.CORE_PARALLEL on axis 0 (or pl.core_map
            # over create_tensorcore_mesh) shards the row range across both
            # TensorCores; "parallel" is kept so 1-TC chips run unmodified.
            dimension_semantics=("parallel", "arbitrary"),
            vmem_limit_bytes=vmem_limit),
    )(x2, t2)

    # Tiny final reductions + dice ratio on (num_parallel, 8, 128) partials.
    intersection = jnp.sum(part_pt)
    union = jnp.sum(part_s)
    dice = (2.0 * intersection + smooth) / (union + smooth + eps)
    return 1.0 - dice


def dice_loss_ref(inputs, targets, smooth=SMOOTH, eps=EPS):
    p = jax.nn.sigmoid(inputs.astype(jnp.float32)).reshape(-1)
    t = targets.astype(jnp.float32).reshape(-1)
    intersection = jnp.sum(p * t)
    union = jnp.sum(p) + jnp.sum(t)
    dice = (2.0 * intersection + smooth) / (union + smooth + eps)
    return 1.0 - dice


if __name__ == "__main__":
    key = jax.random.PRNGKey(0)

    # (shape, target dtype, block_rows override) — exercise the unmasked path,
    # the masked tail / partial-block path, the int8 target stream, the
    # two-way parallel split, and the clamped rounded-up grid step.
    cases = [
        ((2, 1, 16, 16), jnp.float32, None),   # tiny: single partial block (masked)
        ((2, 1, 32, 64), jnp.float32, None),   # exactly one full block (unmasked)
        ((2, 1, 80, 80), jnp.bool_, None),     # bool->int8 targets, partial tail
        ((2, 1, 48, 64), jnp.float32, 32),     # 2 cores, full + masked blocks
        ((2, 1, 88, 64), jnp.float32, 32),     # 3 blocks on 2 cores: clamped step
    ]

    for shape, t_dtype, brows in cases:
        key, k1, k2 = jax.random.split(key, 3)
        logits = jax.random.normal(k1, shape, dtype=jnp.float32)
        tgt = jax.random.uniform(k2, shape) > 0.5
        if t_dtype != jnp.bool_:
            tgt = tgt.astype(t_dtype)

        loss = jax.block_until_ready(dice_loss(logits, tgt, block_rows=brows))
        ref = jax.block_until_ready(dice_loss_ref(logits, tgt))
        assert jnp.allclose(loss, ref, atol=1e-4, rtol=1e-4), (shape, loss, ref)

    print("KERNEL_OK")
</pallas_src>

<mosaic_0001>
module attributes {stable_mosaic.version = 11 : i64} {
  func.func @_dice_partial_kernel(%arg0: i32, %arg1: i32, %arg2: memref<32x128xf32, #tpu.memory_space<vmem>>, %arg3: memref<32x128xf32, #tpu.memory_space<vmem>>, %arg4: memref<1x8x128xf32, #tpu.memory_space<vmem>>, %arg5: memref<1x8x128xf32, #tpu.memory_space<vmem>>) attributes {dimension_semantics = [#tpu.dimension_semantics<parallel>, #tpu.dimension_semantics<arbitrary>], iteration_bounds = array<i64: 1, 1>, scalar_prefetch = 0 : i64, scratch_operands = 0 : i64, tpu.core_type = #tpu.core_type<tc>, window_params = [{transform_indices = @transform_0, window_bounds = array<i64: 32, 128>}, {transform_indices = @transform_1, window_bounds = array<i64: 32, 128>}, {transform_indices = @transform_2, window_bounds = array<i64: 1, 8, 128>}, {transform_indices = @transform_3, window_bounds = array<i64: 1, 8, 128>}]} {
    %c0_i32 = arith.constant 0 : i32
    %0 = arith.cmpi eq, %arg1, %c0_i32 : i32
    %1 = arith.extui %0 : i1 to i32
    %c0_i32_0 = arith.constant 0 : i32
    %2 = arith.cmpi ne, %1, %c0_i32_0 : i32
    scf.if %2 {
      %cst_11 = arith.constant 0.000000e+00 : f32
      %23 = vector.broadcast %cst_11 : f32 to vector<1x8x128xf32>
      %c0_12 = arith.constant 0 : index
      %c0_13 = arith.constant 0 : index
      %c0_14 = arith.constant 0 : index
      %24 = vector.load %arg4[%c0_12, %c0_13, %c0_14] : memref<1x8x128xf32, #tpu.memory_space<vmem>>, vector<1x8x128xf32>
      tpu.vector_store %arg4[%c0_12, %c0_13, %c0_14], %23 {strides = array<i32>} : memref<1x8x128xf32, #tpu.memory_space<vmem>>, vector<1x8x128xf32>,
      %cst_15 = arith.constant 0.000000e+00 : f32
      %25 = vector.broadcast %cst_15 : f32 to vector<1x8x128xf32>
      %c0_16 = arith.constant 0 : index
      %c0_17 = arith.constant 0 : index
      %c0_18 = arith.constant 0 : index
      %26 = vector.load %arg5[%c0_16, %c0_17, %c0_18] : memref<1x8x128xf32, #tpu.memory_space<vmem>>, vector<1x8x128xf32>
      tpu.vector_store %arg5[%c0_16, %c0_17, %c0_18], %25 {strides = array<i32>} : memref<1x8x128xf32, #tpu.memory_space<vmem>>, vector<1x8x128xf32>,
    } else {
    }
    %c0 = arith.constant 0 : index
    %c0_1 = arith.constant 0 : index
    %3 = vector.load %arg2[%c0, %c0_1] : memref<32x128xf32, #tpu.memory_space<vmem>>, vector<32x128xf32>
    %c0_2 = arith.constant 0 : index
    %c0_3 = arith.constant 0 : index
    %4 = vector.load %arg3[%c0_2, %c0_3] : memref<32x128xf32, #tpu.memory_space<vmem>>, vector<32x128xf32>
    %cst = arith.constant 5.000000e-01 : f32
    %5 = vector.broadcast %cst : f32 to vector<32x128xf32>
    %6 = arith.mulf %5, %3 : vector<32x128xf32>
    %7 = math.tanh %6 : vector<32x128xf32>
    %cst_4 = arith.constant 5.000000e-01 : f32
    %8 = vector.broadcast %cst_4 : f32 to vector<32x128xf32>
    %9 = arith.mulf %8, %7 : vector<32x128xf32>
    %cst_5 = arith.constant 5.000000e-01 : f32
    %10 = vector.broadcast %cst_5 : f32 to vector<32x128xf32>
    %11 = arith.addf %9, %10 : vector<32x128xf32>
    %c1_i32 = arith.constant 1 : i32
    %12 = arith.muli %arg0, %c1_i32 : i32
    %13 = arith.addi %12, %arg1 : i32
    %c32_i32 = arith.constant 32 : i32
    %14 = arith.muli %13, %c32_i32 : i32
    %c32_i32_6 = arith.constant 32 : i32
    %15 = arith.addi %14, %c32_i32_6 : i32
    %c4_i32 = arith.constant 4 : i32
    %16 = arith.cmpi sle, %15, %c4_i32 : i32
    %17 = arith.extui %16 : i1 to i32
    %c0_i32_7 = arith.constant 0 : i32
    %18 = arith.cmpi ne, %17, %c0_i32_7 : i32
    scf.if %18 {
      %23 = arith.mulf %11, %4 : vector<32x128xf32>
      %24 = arith.addf %11, %4 : vector<32x128xf32>
      %c0_11 = arith.constant 0 : index
      %c0_12 = arith.constant 0 : index
      %c0_13 = arith.constant 0 : index
      %25 = vector.load %arg4[%c0_11, %c0_12, %c0_13] : memref<1x8x128xf32, #tpu.memory_space<vmem>>, vector<1x8x128xf32>
      %26 = vector.shape_cast %23 : vector<32x128xf32> to vector<4x8x128xf32>
      %cst_14 = arith.constant dense<0.000000e+00> : vector<8x128xf32>
      %27 = vector.multi_reduction <add>, %26, %cst_14 [0] : vector<4x8x128xf32> to vector<8x128xf32>
      %28 = vector.shape_cast %27 : vector<8x128xf32> to vector<1x8x128xf32>
      %29 = arith.addf %25, %28 : vector<1x8x128xf32>
      %c0_15 = arith.constant 0 : index
      %c0_16 = arith.constant 0 : index
      %c0_17 = arith.constant 0 : index
      %30 = vector.load %arg4[%c0_15, %c0_16, %c0_17] : memref<1x8x128xf32, #tpu.memory_space<vmem>>, vector<1x8x128xf32>
      tpu.vector_store %arg4[%c0_15, %c0_16, %c0_17], %29 {strides = array<i32>} : memref<1x8x128xf32, #tpu.memory_space<vmem>>, vector<1x8x128xf32>,
      %c0_18 = arith.constant 0 : index
      %c0_19 = arith.constant 0 : index
      %c0_20 = arith.constant 0 : index
      %31 = vector.load %arg5[%c0_18, %c0_19, %c0_20] : memref<1x8x128xf32, #tpu.memory_space<vmem>>, vector<1x8x128xf32>
      %32 = vector.shape_cast %24 : vector<32x128xf32> to vector<4x8x128xf32>
      %cst_21 = arith.constant dense<0.000000e+00> : vector<8x128xf32>
      %33 = vector.multi_reduction <add>, %32, %cst_21 [0] : vector<4x8x128xf32> to vector<8x128xf32>
      %34 = vector.shape_cast %33 : vector<8x128xf32> to vector<1x8x128xf32>
      %35 = arith.addf %31, %34 : vector<1x8x128xf32>
      %c0_22 = arith.constant 0 : index
      %c0_23 = arith.constant 0 : index
      %c0_24 = arith.constant 0 : index
      %36 = vector.load %arg5[%c0_22, %c0_23, %c0_24] : memref<1x8x128xf32, #tpu.memory_space<vmem>>, vector<1x8x128xf32>
      tpu.vector_store %arg5[%c0_22, %c0_23, %c0_24], %35 {strides = array<i32>} : memref<1x8x128xf32, #tpu.memory_space<vmem>>, vector<1x8x128xf32>,
    } else {
    }
    %c32_i32_8 = arith.constant 32 : i32
    %19 = arith.addi %14, %c32_i32_8 : i32
    %c4_i32_9 = arith.constant 4 : i32
    %20 = arith.cmpi sgt, %19, %c4_i32_9 : i32
    %21 = arith.extui %20 : i1 to i32
    %c0_i32_10 = arith.constant 0 : i32
    %22 = arith.cmpi ne, %21, %c0_i32_10 : i32
    scf.if %22 {
      %23 = tpu.iota {dimensions = array<i32: 0>} : vector<32x128xi32>
      %24 = tpu.iota {dimensions = array<i32: 1>} : vector<32x128xi32>
      %25 = vector.broadcast %14 : i32 to vector<32x128xi32>
      %26 = arith.addi %25, %23 : vector<32x128xi32>
      %c4_i32_11 = arith.constant 4 : i32
      %27 = vector.broadcast %c4_i32_11 : i32 to vector<32x128xi32>
      %28 = arith.cmpi slt, %26, %27 : vector<32x128xi32>
      %c4_i32_12 = arith.constant 4 : i32
      %29 = vector.broadcast %c4_i32_12 : i32 to vector<32x128xi32>
      %30 = arith.cmpi eq, %26, %29 : vector<32x128xi32>
      %c0_i32_13 = arith.constant 0 : i32
      %31 = vector.broadcast %c0_i32_13 : i32 to vector<32x128xi32>
      %32 = arith.cmpi slt, %24, %31 : vector<32x128xi32>
      %33 = arith.andi %30, %32 : vector<32x128xi1>
      %34 = arith.ori %28, %33 : vector<32x128xi1>
      %35 = arith.mulf %11, %4 : vector<32x128xf32>
      %36 = arith.addf %11, %4 : vector<32x128xf32>
      %cst_14 = arith.constant 0.000000e+00 : f32
      %37 = vector.broadcast %cst_14 : f32 to vector<32x128xf32>
      %38 = arith.select %34, %35, %37 : vector<32x128xi1>, vector<32x128xf32>
      %cst_15 = arith.constant 0.000000e+00 : f32
      %39 = vector.broadcast %cst_15 : f32 to vector<32x128xf32>
      %40 = arith.select %34, %36, %39 : vector<32x128xi1>, vector<32x128xf32>
      %c0_16 = arith.constant 0 : index
      %c0_17 = arith.constant 0 : index
      %c0_18 = arith.constant 0 : index
      %41 = vector.load %arg4[%c0_16, %c0_17, %c0_18] : memref<1x8x128xf32, #tpu.memory_space<vmem>>, vector<1x8x128xf32>
      %42 = vector.shape_cast %38 : vector<32x128xf32> to vector<4x8x128xf32>
      %cst_19 = arith.constant dense<0.000000e+00> : vector<8x128xf32>
      %43 = vector.multi_reduction <add>, %42, %cst_19 [0] : vector<4x8x128xf32> to vector<8x128xf32>
      %44 = vector.shape_cast %43 : vector<8x128xf32> to vector<1x8x128xf32>
      %45 = arith.addf %41, %44 : vector<1x8x128xf32>
      %c0_20 = arith.constant 0 : index
      %c0_21 = arith.constant 0 : index
      %c0_22 = arith.constant 0 : index
      %46 = vector.load %arg4[%c0_20, %c0_21, %c0_22] : memref<1x8x128xf32, #tpu.memory_space<vmem>>, vector<1x8x128xf32>
      tpu.vector_store %arg4[%c0_20, %c0_21, %c0_22], %45 {strides = array<i32>} : memref<1x8x128xf32, #tpu.memory_space<vmem>>, vector<1x8x128xf32>,
      %c0_23 = arith.constant 0 : index
      %c0_24 = arith.constant 0 : index
      %c0_25 = arith.constant 0 : index
      %47 = vector.load %arg5[%c0_23, %c0_24, %c0_25] : memref<1x8x128xf32, #tpu.memory_space<vmem>>, vector<1x8x128xf32>
      %48 = vector.shape_cast %40 : vector<32x128xf32> to vector<4x8x128xf32>
      %cst_26 = arith.constant dense<0.000000e+00> : vector<8x128xf32>
      %49 = vector.multi_reduction <add>, %48, %cst_26 [0] : vector<4x8x128xf32> to vector<8x128xf32>
      %50 = vector.shape_cast %49 : vector<8x128xf32> to vector<1x8x128xf32>
      %51 = arith.addf %47, %50 : vector<1x8x128xf32>
      %c0_27 = arith.constant 0 : index
      %c0_28 = arith.constant 0 : index
      %c0_29 = arith.constant 0 : index
      %52 = vector.load %arg5[%c0_27, %c0_28, %c0_29] : memref<1x8x128xf32, #tpu.memory_space<vmem>>, vector<1x8x128xf32>
      tpu.vector_store %arg5[%c0_27, %c0_28, %c0_29], %51 {strides = array<i32>} : memref<1x8x128xf32, #tpu.memory_space<vmem>>, vector<1x8x128xf32>,
    } else {
    }
    return
  }
  func.func @transform_0(%arg0: i32, %arg1: i32) -> (i32, i32) {
    %c1_i32 = arith.constant 1 : i32
    %0 = arith.muli %arg0, %c1_i32 : i32
    %1 = arith.addi %0, %arg1 : i32
    %c0_i32 = arith.constant 0 : i32
    %c0_i32_0 = arith.constant 0 : i32
    return %1, %c0_i32 : i32, i32
  }
  func.func @transform_1(%arg0: i32, %arg1: i32) -> (i32, i32) {
    %c1_i32 = arith.constant 1 : i32
    %0 = arith.muli %arg0, %c1_i32 : i32
    %1 = arith.addi %0, %arg1 : i32
    %c0_i32 = arith.constant 0 : i32
    %c0_i32_0 = arith.constant 0 : i32
    return %1, %c0_i32 : i32, i32
  }
  func.func @transform_2(%arg0: i32, %arg1: i32) -> (i32, i32, i32) {
    %c0_i32 = arith.constant 0 : i32
    %c0_i32_0 = arith.constant 0 : i32
    %c0_i32_1 = arith.constant 0 : i32
    return %arg0, %c0_i32, %c0_i32_0 : i32, i32, i32
  }
  func.func @transform_3(%arg0: i32, %arg1: i32) -> (i32, i32, i32) {
    %c0_i32 = arith.constant 0 : i32
    %c0_i32_0 = arith.constant 0 : i32
    %c0_i32_1 = arith.constant 0 : i32
    return %arg0, %c0_i32, %c0_i32_0 : i32, i32, i32
  }
}

</mosaic_0001>

<llo_original>
// kernel: tpu_custom_call.1
$region0: #{tpu_custom_call.1}
  #allocation0 [shape = 'u32[]', space=smem, size = 0x4, offset = 0x4, fixed_abs, tag = 'smem constant byte address 0x4 - core index']
  #allocation1 [shape = 'u32[144,128]{1,0:T(1,128)}', space=vmem, size = 0x12000, scoped, tag = 'internal scratch']
  %s0 = inlined_call_operand.hbm [shape: f32[4,128], index: 0, kind: input, shape index: {}]
  %s1 = inlined_call_operand.hbm [shape: f32[4,128], index: 1, kind: input, shape index: {}]
  %s2 = inlined_call_operand.hbm [shape: f32[1,8,128], index: 2, kind: output, shape index: {0}]
  %s3 = inlined_call_operand.hbm [shape: f32[1,8,128], index: 3, kind: output, shape index: {1}]
  %4 = xla_tuple %s2, %s3
  %s5 = sld [smem:[#allocation0]]
  $region46: #{tpu_custom_call.1} parent=0
    _
  %s7 = ssub.s32 1, %s5
  %s8 = scalar_select 0, %s7, %s5
  $region1: #{tpu_custom_call.1} parent=0
    #allocation2 [shape = 'u8[16384]{0}', space=vmem, size = 0x4000, scoped, tag = 'input window, operand 0, single buffered']
    #allocation3 [shape = 's32[1]{0}', space=sflag, size = 0x4, scoped, tag = 'scoped memory for tpu_custom_call.1']
    #allocation4 [shape = 's32[1]{0}', space=sflag, size = 0x4, scoped, tag = 'scoped memory for tpu_custom_call.1']
    #allocation5 [shape = 'u8[16384]{0}', space=vmem, size = 0x4000, scoped, tag = 'input window, operand 1, single buffered']
    #allocation6 [shape = 's32[1]{0}', space=sflag, size = 0x4, scoped, tag = 'scoped memory for tpu_custom_call.1']
    #allocation7 [shape = 'u8[4096]{0}', space=vmem, size = 0x1000, scoped, tag = 'output window, operand 0, single buffered']
    #allocation8 [shape = 'u8[4096]{0}', space=vmem, size = 0x1000, scoped, tag = 'output window, operand 1, single buffered']
    #allocation9 [shape = 's32[1]{0}', space=sflag, size = 0x4, scoped, tag = 'scoped memory for tpu_custom_call.1']
    %9 = vsyncpa [#allocation3], 0
    %10 = vsyncpa [#allocation6], 0
    %11 = vsyncpa [#allocation4], 0
    %12 = vsyncpa [#allocation9], 0
    // Predicated region
    $region2: #{tpu_custom_call.1} parent=1 // pred_check
      _
    $region3: #{tpu_custom_call.1} parent=1 // pred_check_branch
      %14 = sbr.rel (0) target = $region5
    $region4: #{tpu_custom_call.1} parent=1 // pred_region
      %s15 = sadd.s32 0, 0
      %s16 = smul.u32 8, %s15
      %s17 = ssub.s32 1, %s16
      %s18 = smul.u32 64, %s17
      %s20 = ssub.s32 512, %s18
      %21 = vsyncadd [#allocation3], %s20
      %p22 = scmp.ne.s32.totalorder 0, %s18
      %s23 = smul.addr %s16, 64
      %s24 = scalar_lea.hbm %s0, %s23
      %s25 = smul.u32 4, %s17
      %s26 = sshll.u32 [#allocation2], 4
      %s27 = int_to_ptr.vmem [resolvable:$true] %s26
      %s28 = sshll.u32 %s25, 4
      %32 = dma.hbm_to_vmem [thread:$0]  (%p22), %s24, %s28, %s27, [#allocation3], 64, 64, 4
    $region5: #{tpu_custom_call.1} parent=1 // pred_fallthru
      _
    // Predicated region
    $region6: #{tpu_custom_call.1} parent=1 // pred_check
      _
    $region7: #{tpu_custom_call.1} parent=1 // pred_check_branch
      %34 = sbr.rel (0) target = $region9
    $region8: #{tpu_custom_call.1} parent=1 // pred_region
      %s35 = sadd.s32 0, 0
      %s36 = smul.u32 8, %s35
      %s37 = ssub.s32 1, %s36
      %s38 = smul.u32 64, %s37
      %s40 = ssub.s32 512, %s38
      %41 = vsyncadd [#allocation6], %s40
      %p42 = scmp.ne.s32.totalorder 0, %s38
      %s43 = smul.addr %s36, 64
      %s44 = scalar_lea.hbm %s1, %s43
      %s45 = smul.u32 4, %s37
      %s46 = sshll.u32 [#allocation5], 4
      %s47 = int_to_ptr.vmem [resolvable:$true] %s46
      %s48 = sshll.u32 %s45, 4
      %52 = dma.hbm_to_vmem [thread:$0]  (%p42), %s44, %s48, %s47, [#allocation6], 64, 64, 4
    $region9: #{tpu_custom_call.1} parent=1 // pred_fallthru
      _
    // Predicated region
    $region10: #{tpu_custom_call.1} parent=1 // pred_check
      _
    $region11: #{tpu_custom_call.1} parent=1 // pred_check_branch
      %54 = sbr.rel (0) target = $region13
    $region12: #{tpu_custom_call.1} parent=1 // pred_region
      %55 = dma.done [#allocation3], 512
    $region13: #{tpu_custom_call.1} parent=1 // pred_fallthru
      _
    // Predicated region
    $region14: #{tpu_custom_call.1} parent=1 // pred_check
      _
    $region15: #{tpu_custom_call.1} parent=1 // pred_check_branch
      %57 = sbr.rel (0) target = $region17
    $region16: #{tpu_custom_call.1} parent=1 // pred_region
      %58 = dma.done [#allocation6], 512
    $region17: #{tpu_custom_call.1} parent=1 // pred_fallthru
      _
    %s59 = sadd.s32 0, 0
    %s60 = smul.u32 8, %s59
    %s61 = ssub.s32 1, %s60
    %s62 = smul.u32 64, %s61
    %s63 = sadd.s32 0, 0
    %s64 = smul.u32 8, %s63
    %s65 = ssub.s32 1, %s64
    %s66 = smul.u32 64, %s65
    %p67 = scmp.eq.s32.totalorder 0, 0
    // Predicated region
    $region18: #{tpu_custom_call.1} parent=1 // pred_check
      %p68 = pneg %p67
    $region19: #{tpu_custom_call.1} parent=1 // pred_check_branch
      %70 = sbr.rel (%p68) target = $region21
    $region20: #{tpu_custom_call.1} parent=1 // pred_region
      %71 = vst [vmem:[#allocation7] sm:$0xff] 0.0
      %72 = vst [vmem:[#allocation8] sm:$0xff] 0.0
    $region21: #{tpu_custom_call.1} parent=1 // pred_fallthru
      _
    %v73 = vld [vmem:[#allocation2] sm:$0xff]
    %v74 = vld [vmem:[#allocation2 + $0x8] sm:$0xff]
    %v75 = vld [vmem:[#allocation2 + $0x10] sm:$0xff]
    %v76 = vld [vmem:[#allocation2 + $0x18] sm:$0xff]
    %v77 = vld [vmem:[#allocation5] sm:$0xff]
    %v78 = vld [vmem:[#allocation5 + $0x8] sm:$0xff]
    %v79 = vld [vmem:[#allocation5 + $0x10] sm:$0xff]
    %v80 = vld [vmem:[#allocation5 + $0x18] sm:$0xff]
    %v81 = vmul.f32 %v73, 0.5
    %v82 = vmul.f32 %v74, 0.5
    %v83 = vmul.f32 %v75, 0.5
    %v84 = vmul.f32 %v76, 0.5
    %v85 = vtanh.pop %v81
    %v86 = vtanh.pop %v82
    %v87 = vtanh.pop %v83
    %v88 = vtanh.pop %v84
    %v89 = vmul.f32 %v85, 0.5
    %v90 = vmul.f32 %v86, 0.5
    %v91 = vmul.f32 %v87, 0.5
    %v92 = vmul.f32 %v88, 0.5
    %v93 = vadd.f32 %v89, 0.5
    %v94 = vadd.f32 %v90, 0.5
    %v95 = vadd.f32 %v91, 0.5
    %v96 = vadd.f32 %v92, 0.5
    %s97 = sadd.s32 0, 0
    %s98 = smul.u32 %s97, 32
    %s99 = sadd.s32 %s98, 32
    %p100 = scmp.le.s32.totalorder %s99, 4
    // Predicated region
    $region22: #{tpu_custom_call.1} parent=1 // pred_check
      %p101 = pneg %p100
    $region23: #{tpu_custom_call.1} parent=1 // pred_check_branch
      %103 = sbr.rel (%p101) target = $region25
    $region24: #{tpu_custom_call.1} parent=1 // pred_region
      %v104 = vmul.f32 %v93, %v77
      %v105 = vmul.f32 %v94, %v78
      %v106 = vmul.f32 %v95, %v79
      %v107 = vmul.f32 %v96, %v80
      %v108 = vadd.f32 %v93, %v77
      %v109 = vadd.f32 %v94, %v78
      %v110 = vadd.f32 %v95, %v79
      %v111 = vadd.f32 %v96, %v80
      %v112 = vld [vmem:[#allocation7] sm:$0xff]
      %v113 = vadd.f32 %v104, %v105
      %v114 = vadd.f32 %v113, %v106
      %v115 = vadd.f32 %v114, %v107
      %v116 = vadd.f32 %v112, %v115
      %117 = vst [vmem:[#allocation7] sm:$0xff] %v116
      %v118 = vld [vmem:[#allocation8] sm:$0xff]
      %v119 = vadd.f32 %v108, %v109
      %v120 = vadd.f32 %v119, %v110
      %v121 = vadd.f32 %v120, %v111
      %v122 = vadd.f32 %v118, %v121
      %123 = vst [vmem:[#allocation8] sm:$0xff] %v122
    $region25: #{tpu_custom_call.1} parent=1 // pred_fallthru
      _
    %p124 = scmp.gt.s32.totalorder %s99, 4
    // Predicated region
    $region26: #{tpu_custom_call.1} parent=1 // pred_check
      %p125 = pneg %p124
    $region27: #{tpu_custom_call.1} parent=1 // pred_check_branch
      %127 = sbr.rel (%p125) target = $region29
    $region28: #{tpu_custom_call.1} parent=1 // pred_region
      %v128 = vlaneseq
      %v129 = vshrl.u32 %v128, 7
      %v130 = vadd.s32 %v129, 8
      %v131 = vadd.s32 %v129, 16
      %v132 = vadd.s32 %v129, 24
      %v133 = vlaneseq
      %v134 = vand.u32 %v133, 127
      %v135 = vstv %s98
      %v136 = vadd.s32 %v135, %v129
      %v137 = vadd.s32 %v135, %v130
      %v138 = vadd.s32 %v135, %v131
      %v139 = vadd.s32 %v135, %v132
      %vm140 = vcmp.lt.s32.totalorder %v136, 4
      %vm141 = vcmp.lt.s32.totalorder %v137, 4
      %vm142 = vcmp.lt.s32.totalorder %v138, 4
      %vm143 = vcmp.lt.s32.totalorder %v139, 4
      %vm144 = vcmp.eq.s32.totalorder %v136, 4
      %vm145 = vcmp.eq.s32.totalorder %v137, 4
      %vm146 = vcmp.eq.s32.totalorder %v138, 4
      %vm147 = vcmp.eq.s32.totalorder %v139, 4
      %vm148 = vcmp.lt.s32.totalorder %v134, 0
      %vm149 = vmand %vm144, %vm148
      %vm150 = vmand %vm145, %vm148
      %vm151 = vmand %vm146, %vm148
      %vm152 = vmand %vm147, %vm148
      %vm153 = vmor %vm140, %vm149
      %vm154 = vmor %vm141, %vm150
      %vm155 = vmor %vm142, %vm151
      %vm156 = vmor %vm143, %vm152
      %v157 = vmul.f32 %v93, %v77
      %v158 = vmul.f32 %v94, %v78
      %v159 = vmul.f32 %v95, %v79
      %v160 = vmul.f32 %v96, %v80
      %v161 = vadd.f32 %v93, %v77
      %v162 = vadd.f32 %v94, %v78
      %v163 = vadd.f32 %v95, %v79
      %v164 = vadd.f32 %v96, %v80
      %v165 = vsel %vm153, %v157, 0.0
      %v166 = vsel %vm154, %v158, 0.0
      %v167 = vsel %vm155, %v159, 0.0
      %v168 = vsel %vm156, %v160, 0.0
      %v169 = vsel %vm153, %v161, 0.0
      %v170 = vsel %vm154, %v162, 0.0
      %v171 = vsel %vm155, %v163, 0.0
      %v172 = vsel %vm156, %v164, 0.0
      %v173 = vld [vmem:[#allocation7] sm:$0xff]
      %v174 = vadd.f32 %v165, %v166
      %v175 = vadd.f32 %v174, %v167
      %v176 = vadd.f32 %v175, %v168
      %v177 = vadd.f32 %v173, %v176
      %178 = vst [vmem:[#allocation7] sm:$0xff] %v177
      %v179 = vld [vmem:[#allocation8] sm:$0xff]
      %v180 = vadd.f32 %v169, %v170
      %v181 = vadd.f32 %v180, %v171
      %v182 = vadd.f32 %v181, %v172
      %v183 = vadd.f32 %v179, %v182
      %184 = vst [vmem:[#allocation8] sm:$0xff] %v183
    $region29: #{tpu_custom_call.1} parent=1 // pred_fallthru
      _
    // Predicated region
    $region30: #{tpu_custom_call.1} parent=1 // pred_check
      _
    $region31: #{tpu_custom_call.1} parent=1 // pred_check_branch
      %186 = sbr.rel (0) target = $region33
    $region32: #{tpu_custom_call.1} parent=1 // pred_region
      %s188 = ssub.s32 128, 128
      %189 = vsyncadd [#allocation4], %s188
      %s191 = sshll.u32 [#allocation7], 4
      %s192 = int_to_ptr.vmem [resolvable:$true] %s191
      %194 = dma.vmem_to_hbm [thread:$0]  %s192, 128, %s2, [#allocation4]
    $region33: #{tpu_custom_call.1} parent=1 // pred_fallthru
      _
    // Predicated region
    $region34: #{tpu_custom_call.1} parent=1 // pred_check
      _
    $region35: #{tpu_custom_call.1} parent=1 // pred_check_branch
      %196 = sbr.rel (0) target = $region37
    $region36: #{tpu_custom_call.1} parent=1 // pred_region
      %s198 = ssub.s32 128, 128
      %199 = vsyncadd [#allocation9], %s198
      %s201 = sshll.u32 [#allocation8], 4
      %s202 = int_to_ptr.vmem [resolvable:$true] %s201
      %204 = dma.vmem_to_hbm [thread:$0]  %s202, 128, %s3, [#allocation9]
    $region37: #{tpu_custom_call.1} parent=1 // pred_fallthru
      _
    // Predicated region
    $region38: #{tpu_custom_call.1} parent=1 // pred_check
      _
    $region39: #{tpu_custom_call.1} parent=1 // pred_check_branch
      %206 = sbr.rel (0) target = $region41
    $region40: #{tpu_custom_call.1} parent=1 // pred_region
      %207 = dma.done [#allocation4], 128
    $region41: #{tpu_custom_call.1} parent=1 // pred_fallthru
      _
    // Predicated region
    $region42: #{tpu_custom_call.1} parent=1 // pred_check
      _
    $region43: #{tpu_custom_call.1} parent=1 // pred_check_branch
      %209 = sbr.rel (0) target = $region45
    $region44: #{tpu_custom_call.1} parent=1 // pred_region
      %210 = dma.done [#allocation9], 128
    $region45: #{tpu_custom_call.1} parent=1 // pred_fallthru
      _
    %211 = vsyncpa [#allocation3], 1
    %212 = vsyncpa [#allocation6], 1
    %213 = vsyncpa [#allocation4], 1
    %214 = vsyncpa [#allocation9], 1

</llo_original>
